<compile_context>
chip_gen: v7x
topology: tpu7x:2x2x1
jax: 0.10.0
libtpu: 0.0.40
codegen_flags: <defaults>
</compile_context>

<pallas_src>
import math

import jax
import jax.numpy as jnp
from jax import lax
from jax.experimental import pallas as pl
from jax.experimental.pallas import tpu as pltpu
import numpy as np

# ---------------- problem sizes (small, consistent with the module) ----------
B = 2             # batch of graphs packed into one pallas_call
N = 16            # number of graph nodes
E = 48            # number of edges (multiple of 8 -> clean sublane slices)
IN_F = 8          # in_features
HID = 16          # hidden_features
OUT_DIM = 8       # output_dim
NUM_HEADS = 2
FINAL_IN = HID * NUM_HEADS   # agg_mode == 'concat'
PAD = 128                    # lane-dense output width
LN_EPS = 1e-5


# ---------------------------- Pallas kernel ----------------------------------
def mhdotgat_kernel(x_ref, rc_ref, w_ref, aff_ref, wob_ref, out_ref):
    x = x_ref[...]                      # [N, IN_F]
    rc = rc_ref[...]                    # [2E, N]  (R stacked on C, one-hot f32)
    inv_scale = 1.0 / math.sqrt(HID)

    # One fused projection for everything that reads x:
    # columns = [Q_all | K_all | per-head residual | top residual]
    xw = jnp.dot(x, w_ref[...], preferred_element_type=jnp.float32)   # [N, 4*FINAL_IN]
    resid_heads = xw[:, 2 * FINAL_IN:3 * FINAL_IN]                    # [N, FINAL_IN]
    resid_top   = xw[:, 3 * FINAL_IN:4 * FINAL_IN]                    # [N, FINAL_IN]

    # Single fused endpoint gather: R rows on top, C rows below, one MXU pass.
    g = jnp.dot(rc, xw, preferred_element_type=jnp.float32)           # [2E, 4*FINAL_IN]
    Qr = g[:E, 0 * FINAL_IN:1 * FINAL_IN]                             # Q[row] : [E, FINAL_IN]
    Kc = g[E:, 1 * FINAL_IN:2 * FINAL_IN]                             # K[col] : [E, FINAL_IN]

    # Head-wise dot(Q[row], K[col]) via masked lane reductions (VPU/XLU, no tiny MXU passes).
    head1 = lax.broadcasted_iota(jnp.int32, (E, FINAL_IN), 1) >= HID  # lane belongs to head 1
    prod = Qr * Kc
    l0 = jnp.sum(jnp.where(head1, 0.0, prod), axis=-1, keepdims=True) # [E,1] head-0 logits
    l1 = jnp.sum(jnp.where(head1, prod, 0.0), axis=-1, keepdims=True) # [E,1] head-1 logits
    logits = jnp.where(head1, l1, l0) * inv_scale                     # [E, FINAL_IN] (per-lane = its head)

    # Softmax over ALL edges (dim=0, as in the module); per-lane softmax == per-head softmax.
    m = jnp.max(logits, axis=0, keepdims=True)                        # [1, FINAL_IN]
    e = jnp.exp(logits - m)
    alpha = e / jnp.sum(e, axis=0, keepdims=True)                     # exact divide (no approx recip)

    # Weighted messages; scatter-add by col = contract edge axis of C (no separate C^T operand).
    msg = Qr * alpha                                                  # [E, FINAL_IN]
    C = rc[E:]                                                        # [E, N]
    agg = lax.dot_general(C, msg, (((0,), (0,)), ((), ())),
                          preferred_element_type=jnp.float32)         # [N, FINAL_IN]

    aff = aff_ref[...]                                                # [4, FINAL_IN]
    br, gamma, beta, bres = aff[0:1], aff[1:2], aff[2:3], aff[3:4]

    # Per-head agg + per-head residual Linear; heads already concatenated by layout.
    y = agg + resid_heads + br                                        # [N, FINAL_IN]

    # LayerNorm over last dim (biased variance, eps=1e-5), then affine.
    mean = jnp.mean(y, axis=-1, keepdims=True)
    var = jnp.mean((y - mean) ** 2, axis=-1, keepdims=True)
    y = (y - mean) * lax.rsqrt(var + LN_EPS)
    y = y * gamma + beta

    # dropout skipped (eval mode), Swish.
    y = y * jax.nn.sigmoid(y)

    # Top-level residual Linear, then output Linear (wo padded to 128 lanes -> dense store).
    y = y + resid_top + bres
    wob = wob_ref[...]                                                # [FINAL_IN + 1, PAD]
    out_ref[...] = (jnp.dot(y, wob[:FINAL_IN], preferred_element_type=jnp.float32)
                    + wob[FINAL_IN:FINAL_IN + 1])                     # [N, PAD]


def multihead_dotgat(x, edge_index, params):
    """x: [B, N, IN_F], edge_index: [B, 2, E] int32. Returns [B, N, OUT_DIM]."""
    row = edge_index[:, 0, :]                                         # [B, E]
    col = edge_index[:, 1, :]                                         # [B, E]
    R = jax.nn.one_hot(row, N, dtype=jnp.float32)                     # [B, E, N]
    C = jax.nn.one_hot(col, N, dtype=jnp.float32)                     # [B, E, N]
    rc = jnp.concatenate([R, C], axis=1)                              # [B, 2E, N]

    # Head-fused weight slab: columns = [Q_all | K_all | Wr_all | Wres] -> [IN_F, 4*FINAL_IN]
    def fuse(w):  # [NUM_HEADS, IN_F, HID] -> [IN_F, NUM_HEADS*HID]
        return jnp.transpose(w, (1, 0, 2)).reshape(IN_F, NUM_HEADS * HID)

    w_slab = jnp.concatenate(
        [fuse(params["wq"]), fuse(params["wk"]), fuse(params["wr"]), params["wres"]],
        axis=1)                                                       # [IN_F, 4*FINAL_IN]

    # Affine / bias rows at FINAL_IN lane width.
    aff = jnp.concatenate(
        [params["br"].reshape(1, FINAL_IN), params["gamma"], params["beta"], params["bres"]],
        axis=0)                                                       # [4, FINAL_IN]

    # Output weight + bias padded to 128 lanes (lane-dense store; slice in wrapper).
    wo_pad = jnp.zeros((FINAL_IN, PAD), jnp.float32).at[:, :OUT_DIM].set(params["wo"])
    bo_pad = jnp.zeros((1, PAD), jnp.float32).at[:, :OUT_DIM].set(params["bo"])
    wob = jnp.concatenate([wo_pad, bo_pad], axis=0)                   # [FINAL_IN + 1, PAD]

    nb = x.shape[0]
    out = pl.pallas_call(
        mhdotgat_kernel,
        out_shape=jax.ShapeDtypeStruct((nb, N, PAD), jnp.float32),
        grid=(nb,),
        in_specs=[
            pl.BlockSpec((None, N, IN_F), lambda b: (b, 0, 0)),       # x (per graph)
            pl.BlockSpec((None, 2 * E, N), lambda b: (b, 0, 0)),      # R|C (per graph)
            pl.BlockSpec((IN_F, 4 * FINAL_IN), lambda b: (0, 0)),     # fused weight slab (shared)
            pl.BlockSpec((4, FINAL_IN), lambda b: (0, 0)),            # br/gamma/beta/bres (shared)
            pl.BlockSpec((FINAL_IN + 1, PAD), lambda b: (0, 0)),      # wo|bo padded (shared)
        ],
        out_specs=pl.BlockSpec((None, N, PAD), lambda b: (b, 0, 0)),
        compiler_params=pltpu.CompilerParams(
            dimension_semantics=("parallel",)),                       # shard batch across TCs (v7x)
    )(x, rc, w_slab, aff, wob)
    return out[:, :, :OUT_DIM]


# --------------------------- pure-JAX reference -------------------------------
def reference(x, edge_index, params):
    row, col = edge_index[0], edge_index[1]
    head_outs = []
    for h in range(NUM_HEADS):
        Q = x @ params["wq"][h]
        K = x @ params["wk"][h]
        alpha = jnp.sum(Q[row] * K[col], axis=-1) / math.sqrt(HID)
        alpha = jax.nn.softmax(alpha, axis=0)
        out = Q[row] * alpha[:, None]
        agg = jnp.zeros_like(Q).at[col].add(out)
        head_outs.append(agg + x @ params["wr"][h] + params["br"][h])
    y = jnp.concatenate(head_outs, axis=1)
    mean = y.mean(-1, keepdims=True)
    var = ((y - mean) ** 2).mean(-1, keepdims=True)
    y = (y - mean) / jnp.sqrt(var + LN_EPS) * params["gamma"] + params["beta"]
    y = y * jax.nn.sigmoid(y)
    y = y + x @ params["wres"] + params["bres"]
    return y @ params["wo"] + params["bo"]


# ------------------------------ main ------------------------------------------
if __name__ == "__main__":
    key = jax.random.PRNGKey(0)
    keys = jax.random.split(key, 16)

    def unif(k, shape, fan_in):
        bound = 1.0 / math.sqrt(fan_in)
        return jax.random.uniform(k, shape, jnp.float32, -bound, bound)

    # Deterministic parameter init (PyTorch-like uniform ranges), pre-transposed [in, out].
    params = {
        "wq":   unif(keys[0], (NUM_HEADS, IN_F, HID), IN_F),
        "wk":   unif(keys[1], (NUM_HEADS, IN_F, HID), IN_F),
        "wr":   unif(keys[2], (NUM_HEADS, IN_F, HID), IN_F),
        "br":   unif(keys[3], (NUM_HEADS, HID), IN_F),
        "gamma": jnp.ones((1, FINAL_IN), jnp.float32),
        "beta":  jnp.zeros((1, FINAL_IN), jnp.float32),
        "wres": unif(keys[4], (IN_F, FINAL_IN), IN_F),
        "bres": unif(keys[5], (1, FINAL_IN), IN_F),
        "wo":   unif(keys[6], (FINAL_IN, OUT_DIM), FINAL_IN),
        "bo":   unif(keys[7], (1, OUT_DIM), FINAL_IN),
    }

    x = jax.random.normal(keys[8], (B, N, IN_F), jnp.float32)
    edge_index = jax.random.randint(keys[9], (B, 2, E), 0, N, dtype=jnp.int32)

    out = multihead_dotgat(x, edge_index, params)
    out = jax.block_until_ready(out)

    for b in range(B):
        ref = reference(x[b], edge_index[b], params)
        np.testing.assert_allclose(np.asarray(out[b]), np.asarray(ref),
                                   rtol=1e-4, atol=1e-4)

    print("KERNEL_OK")
</pallas_src>

<mosaic_0001>
module attributes {stable_mosaic.version = 11 : i64} {
  func.func @mhdotgat_kernel(%arg0: i32, %arg1: memref<1x16x8xf32, #tpu.memory_space<vmem>>, %arg2: memref<1x96x16xf32, #tpu.memory_space<vmem>>, %arg3: memref<8x128xf32, #tpu.memory_space<vmem>>, %arg4: memref<4x32xf32, #tpu.memory_space<vmem>>, %arg5: memref<33x128xf32, #tpu.memory_space<vmem>>, %arg6: memref<1x16x128xf32, #tpu.memory_space<vmem>>) attributes {dimension_semantics = [#tpu.dimension_semantics<parallel>], iteration_bounds = array<i64: 2>, scalar_prefetch = 0 : i64, scratch_operands = 0 : i64, tpu.core_type = #tpu.core_type<tc>, window_params = [{transform_indices = @transform_0, window_bounds = array<i64: 1, 16, 8>}, {transform_indices = @transform_1, window_bounds = array<i64: 1, 96, 16>}, {pipeline_mode = #tpu.pipeline_mode<synchronous>, transform_indices = @transform_2, window_bounds = array<i64: 8, 128>}, {pipeline_mode = #tpu.pipeline_mode<synchronous>, transform_indices = @transform_3, window_bounds = array<i64: 4, 32>}, {pipeline_mode = #tpu.pipeline_mode<synchronous>, transform_indices = @transform_4, window_bounds = array<i64: 33, 128>}, {transform_indices = @transform_5, window_bounds = array<i64: 1, 16, 128>}]} {
    %c0 = arith.constant 0 : index
    %c0_0 = arith.constant 0 : index
    %c0_1 = arith.constant 0 : index
    %0 = vector.load %arg1[%c0, %c0_0, %c0_1] : memref<1x16x8xf32, #tpu.memory_space<vmem>>, vector<1x16x8xf32>
    %1 = vector.shape_cast %0 : vector<1x16x8xf32> to vector<16x8xf32>
    %c0_2 = arith.constant 0 : index
    %c0_3 = arith.constant 0 : index
    %c0_4 = arith.constant 0 : index
    %2 = vector.load %arg2[%c0_2, %c0_3, %c0_4] : memref<1x96x16xf32, #tpu.memory_space<vmem>>, vector<1x96x16xf32>
    %3 = vector.shape_cast %2 : vector<1x96x16xf32> to vector<96x16xf32>
    %c0_5 = arith.constant 0 : index
    %c0_6 = arith.constant 0 : index
    %4 = vector.load %arg3[%c0_5, %c0_6] : memref<8x128xf32, #tpu.memory_space<vmem>>, vector<8x128xf32>
    %cst = arith.constant dense<0.000000e+00> : vector<16x128xf32>
    %5 = tpu.matmul %1, %4, %cst {dimension_numbers = #tpu.dot_dimension_numbers<[1], [0], [0], [1], [0, 0, 1, 1], [], []>} : vector<16x8xf32>, vector<8x128xf32>, vector<16x128xf32> -> vector<16x128xf32>
    %6 = vector.extract_strided_slice %5 {offsets = [0, 64], sizes = [16, 32], strides = [1, 1]} : vector<16x128xf32> to vector<16x32xf32>
    %7 = vector.extract_strided_slice %5 {offsets = [0, 96], sizes = [16, 32], strides = [1, 1]} : vector<16x128xf32> to vector<16x32xf32>
    %cst_7 = arith.constant dense<0.000000e+00> : vector<96x128xf32>
    %8 = tpu.matmul %3, %5, %cst_7 {dimension_numbers = #tpu.dot_dimension_numbers<[1], [0], [0], [1], [0, 0, 1, 1], [], []>} : vector<96x16xf32>, vector<16x128xf32>, vector<96x128xf32> -> vector<96x128xf32>
    %9 = vector.extract_strided_slice %8 {offsets = [0, 0], sizes = [48, 32], strides = [1, 1]} : vector<96x128xf32> to vector<48x32xf32>
    %10 = vector.extract_strided_slice %8 {offsets = [48, 32], sizes = [48, 32], strides = [1, 1]} : vector<96x128xf32> to vector<48x32xf32>
    %11 = tpu.iota {dimensions = array<i32: 1>} : vector<48x32xi32>
    %c16_i32 = arith.constant 16 : i32
    %12 = vector.broadcast %c16_i32 : i32 to vector<48x32xi32>
    %13 = arith.cmpi sge, %11, %12 : vector<48x32xi32>
    %14 = arith.mulf %9, %10 : vector<48x32xf32>
    %cst_8 = arith.constant 0.000000e+00 : f32
    %15 = vector.broadcast %cst_8 : f32 to vector<48x32xf32>
    %16 = arith.select %13, %15, %14 : vector<48x32xi1>, vector<48x32xf32>
    %cst_9 = arith.constant dense<0.000000e+00> : vector<48xf32>
    %17 = vector.multi_reduction <add>, %16, %cst_9 [1] : vector<48x32xf32> to vector<48xf32>
    %18 = vector.shape_cast %17 : vector<48xf32> to vector<48x1xf32>
    %cst_10 = arith.constant 0.000000e+00 : f32
    %19 = vector.broadcast %cst_10 : f32 to vector<48x32xf32>
    %20 = arith.select %13, %14, %19 : vector<48x32xi1>, vector<48x32xf32>
    %cst_11 = arith.constant dense<0.000000e+00> : vector<48xf32>
    %21 = vector.multi_reduction <add>, %20, %cst_11 [1] : vector<48x32xf32> to vector<48xf32>
    %22 = vector.shape_cast %21 : vector<48xf32> to vector<48x1xf32>
    %23 = vector.shape_cast %22 : vector<48x1xf32> to vector<48x1xf32>
    %24 = vector.broadcast %23 : vector<48x1xf32> to vector<48x32xf32>
    %25 = vector.shape_cast %18 : vector<48x1xf32> to vector<48x1xf32>
    %26 = vector.broadcast %25 : vector<48x1xf32> to vector<48x32xf32>
    %27 = arith.select %13, %24, %26 : vector<48x32xi1>, vector<48x32xf32>
    %cst_12 = arith.constant 2.500000e-01 : f32
    %28 = vector.broadcast %cst_12 : f32 to vector<48x32xf32>
    %29 = arith.mulf %27, %28 : vector<48x32xf32>
    %cst_13 = arith.constant dense<0xFF800000> : vector<32xf32>
    %30 = vector.multi_reduction <maximumf>, %29, %cst_13 [0] : vector<48x32xf32> to vector<32xf32>
    %31 = vector.shape_cast %30 : vector<32xf32> to vector<1x32xf32>
    %32 = vector.broadcast %31 : vector<1x32xf32> to vector<48x32xf32>
    %33 = arith.subf %29, %32 : vector<48x32xf32>
    %34 = math.exp %33 : vector<48x32xf32>
    %cst_14 = arith.constant dense<0.000000e+00> : vector<32xf32>
    %35 = vector.multi_reduction <add>, %34, %cst_14 [0] : vector<48x32xf32> to vector<32xf32>
    %36 = vector.shape_cast %35 : vector<32xf32> to vector<1x32xf32>
    %37 = vector.broadcast %36 : vector<1x32xf32> to vector<48x32xf32>
    %38 = arith.divf %34, %37 : vector<48x32xf32>
    %39 = arith.mulf %9, %38 : vector<48x32xf32>
    %40 = vector.extract_strided_slice %3 {offsets = [48, 0], sizes = [48, 16], strides = [1, 1]} : vector<96x16xf32> to vector<48x16xf32>
    %cst_15 = arith.constant dense<0.000000e+00> : vector<16x32xf32>
    %41 = tpu.matmul %40, %39, %cst_15 {dimension_numbers = #tpu.dot_dimension_numbers<[0], [0], [1], [1], [0, 1, 1, 1], [], []>} : vector<48x16xf32>, vector<48x32xf32>, vector<16x32xf32> -> vector<16x32xf32>
    %c0_16 = arith.constant 0 : index
    %c0_17 = arith.constant 0 : index
    %42 = vector.load %arg4[%c0_16, %c0_17] : memref<4x32xf32, #tpu.memory_space<vmem>>, vector<4x32xf32>
    %43 = vector.extract_strided_slice %42 {offsets = [0, 0], sizes = [1, 32], strides = [1, 1]} : vector<4x32xf32> to vector<1x32xf32>
    %44 = vector.extract_strided_slice %42 {offsets = [1, 0], sizes = [1, 32], strides = [1, 1]} : vector<4x32xf32> to vector<1x32xf32>
    %45 = vector.extract_strided_slice %42 {offsets = [2, 0], sizes = [1, 32], strides = [1, 1]} : vector<4x32xf32> to vector<1x32xf32>
    %46 = vector.extract_strided_slice %42 {offsets = [3, 0], sizes = [1, 32], strides = [1, 1]} : vector<4x32xf32> to vector<1x32xf32>
    %47 = arith.addf %41, %6 : vector<16x32xf32>
    %48 = vector.broadcast %43 : vector<1x32xf32> to vector<16x32xf32>
    %49 = arith.addf %47, %48 : vector<16x32xf32>
    %cst_18 = arith.constant dense<0.000000e+00> : vector<16xf32>
    %50 = vector.multi_reduction <add>, %49, %cst_18 [1] : vector<16x32xf32> to vector<16xf32>
    %51 = vector.shape_cast %50 : vector<16xf32> to vector<16x1xf32>
    %cst_19 = arith.constant 3.200000e+01 : f32
    %52 = vector.broadcast %cst_19 : f32 to vector<16x1xf32>
    %53 = arith.divf %51, %52 : vector<16x1xf32>
    %54 = vector.broadcast %53 : vector<16x1xf32> to vector<16x32xf32>
    %55 = arith.subf %49, %54 : vector<16x32xf32>
    %56 = arith.mulf %55, %55 : vector<16x32xf32>
    %cst_20 = arith.constant dense<0.000000e+00> : vector<16xf32>
    %57 = vector.multi_reduction <add>, %56, %cst_20 [1] : vector<16x32xf32> to vector<16xf32>
    %58 = vector.shape_cast %57 : vector<16xf32> to vector<16x1xf32>
    %cst_21 = arith.constant 3.200000e+01 : f32
    %59 = vector.broadcast %cst_21 : f32 to vector<16x1xf32>
    %60 = arith.divf %58, %59 : vector<16x1xf32>
    %61 = vector.broadcast %53 : vector<16x1xf32> to vector<16x32xf32>
    %62 = arith.subf %49, %61 : vector<16x32xf32>
    %cst_22 = arith.constant 9.99999974E-6 : f32
    %63 = vector.broadcast %cst_22 : f32 to vector<16x1xf32>
    %64 = arith.addf %60, %63 : vector<16x1xf32>
    %65 = math.rsqrt %64 : vector<16x1xf32>
    %66 = vector.broadcast %65 : vector<16x1xf32> to vector<16x32xf32>
    %67 = arith.mulf %62, %66 : vector<16x32xf32>
    %68 = vector.broadcast %44 : vector<1x32xf32> to vector<16x32xf32>
    %69 = arith.mulf %67, %68 : vector<16x32xf32>
    %70 = vector.broadcast %45 : vector<1x32xf32> to vector<16x32xf32>
    %71 = arith.addf %69, %70 : vector<16x32xf32>
    %72 = arith.negf %71 : vector<16x32xf32>
    %73 = math.exp %72 : vector<16x32xf32>
    %cst_23 = arith.constant 1.000000e+00 : f32
    %74 = vector.broadcast %cst_23 : f32 to vector<16x32xf32>
    %75 = arith.addf %74, %73 : vector<16x32xf32>
    %76 = arith.divf %74, %75 : vector<16x32xf32>
    %77 = arith.mulf %71, %76 : vector<16x32xf32>
    %78 = arith.addf %77, %7 : vector<16x32xf32>
    %79 = vector.broadcast %46 : vector<1x32xf32> to vector<16x32xf32>
    %80 = arith.addf %78, %79 : vector<16x32xf32>
    %c0_24 = arith.constant 0 : index
    %c0_25 = arith.constant 0 : index
    %81 = vector.load %arg5[%c0_24, %c0_25] : memref<33x128xf32, #tpu.memory_space<vmem>>, vector<33x128xf32>
    %82 = vector.extract_strided_slice %81 {offsets = [0, 0], sizes = [32, 128], strides = [1, 1]} : vector<33x128xf32> to vector<32x128xf32>
    %cst_26 = arith.constant dense<0.000000e+00> : vector<16x128xf32>
    %83 = tpu.matmul %80, %82, %cst_26 {dimension_numbers = #tpu.dot_dimension_numbers<[1], [0], [0], [1], [0, 0, 1, 1], [], []>} : vector<16x32xf32>, vector<32x128xf32>, vector<16x128xf32> -> vector<16x128xf32>
    %84 = vector.extract_strided_slice %81 {offsets = [32, 0], sizes = [1, 128], strides = [1, 1]} : vector<33x128xf32> to vector<1x128xf32>
    %85 = vector.broadcast %84 : vector<1x128xf32> to vector<16x128xf32>
    %86 = arith.addf %83, %85 : vector<16x128xf32>
    %c0_27 = arith.constant 0 : index
    %c0_28 = arith.constant 0 : index
    %c0_29 = arith.constant 0 : index
    %87 = vector.load %arg6[%c0_27, %c0_28, %c0_29] : memref<1x16x128xf32, #tpu.memory_space<vmem>>, vector<1x16x128xf32>
    %88 = vector.shape_cast %87 : vector<1x16x128xf32> to vector<16x128xf32>
    %89 = vector.shape_cast %86 : vector<16x128xf32> to vector<1x16x128xf32>
    tpu.vector_store %arg6[%c0_27, %c0_28, %c0_29], %89 {strides = array<i32>} : memref<1x16x128xf32, #tpu.memory_space<vmem>>, vector<1x16x128xf32>,
    return
  }
  func.func @transform_0(%arg0: i32) -> (i32, i32, i32) {
    %c0_i32 = arith.constant 0 : i32
    %c0_i32_0 = arith.constant 0 : i32
    %c0_i32_1 = arith.constant 0 : i32
    return %arg0, %c0_i32, %c0_i32_0 : i32, i32, i32
  }
  func.func @transform_1(%arg0: i32) -> (i32, i32, i32) {
    %c0_i32 = arith.constant 0 : i32
    %c0_i32_0 = arith.constant 0 : i32
    %c0_i32_1 = arith.constant 0 : i32
    return %arg0, %c0_i32, %c0_i32_0 : i32, i32, i32
  }
  func.func @transform_2(%arg0: i32) -> (i32, i32) {
    %c0_i32 = arith.constant 0 : i32
    %c0_i32_0 = arith.constant 0 : i32
    %c0_i32_1 = arith.constant 0 : i32
    return %c0_i32, %c0_i32_0 : i32, i32
  }
  func.func @transform_3(%arg0: i32) -> (i32, i32) {
    %c0_i32 = arith.constant 0 : i32
    %c0_i32_0 = arith.constant 0 : i32
    %c0_i32_1 = arith.constant 0 : i32
    return %c0_i32, %c0_i32_0 : i32, i32
  }
  func.func @transform_4(%arg0: i32) -> (i32, i32) {
    %c0_i32 = arith.constant 0 : i32
    %c0_i32_0 = arith.constant 0 : i32
    %c0_i32_1 = arith.constant 0 : i32
    return %c0_i32, %c0_i32_0 : i32, i32
  }
  func.func @transform_5(%arg0: i32) -> (i32, i32, i32) {
    %c0_i32 = arith.constant 0 : i32
    %c0_i32_0 = arith.constant 0 : i32
    %c0_i32_1 = arith.constant 0 : i32
    return %arg0, %c0_i32, %c0_i32_0 : i32, i32, i32
  }
}

</mosaic_0001>

<llo_original>
// kernel: tpu_custom_call.1
$region0: #{tpu_custom_call.1}
  #allocation0 [shape = 'u32[]', space=smem, size = 0x4, offset = 0x4, fixed_abs, tag = 'smem constant byte address 0x4 - core index']
  #allocation1 [shape = 'u32[144,128]{1,0:T(1,128)}', space=vmem, size = 0x12000, scoped, tag = 'internal scratch']
  %s0 = inlined_call_operand.vmem [shape: f32[2,16,8], index: 0, kind: input, shape index: {}]
  %s1 = inlined_call_operand.vmem [shape: f32[2,96,16], index: 1, kind: input, shape index: {}]
  %s2 = inlined_call_operand.vmem [shape: f32[8,128], index: 2, kind: input, shape index: {}]
  %s3 = inlined_call_operand.vmem [shape: f32[4,32], index: 3, kind: input, shape index: {}]
  %s4 = inlined_call_operand.vmem [shape: f32[33,128], index: 4, kind: input, shape index: {}]
  %s5 = inlined_call_operand.hbm [shape: f32[2,16,128], index: 5, kind: output, shape index: {}]
  %s6 = sld [smem:[#allocation0]]
  $region53: #{tpu_custom_call.1} parent=0
    _
  %s8 = ssub.s32 1, %s6
  %s9 = scalar_select 0, %s8, %s6
  $region1: #{tpu_custom_call.1} parent=0
    #allocation2 [shape = 'u8[16384]{0}', space=vmem, size = 0x4000, scoped, tag = 'output window, operand 0']
    #allocation3 [shape = 's32[2]{0}', space=sflag, size = 0x8, scoped, tag = 'scoped memory for tpu_custom_call.1']
    %10 = vsyncpa [#allocation3], 0
    %s11 = scalar_lea.sflag [#allocation3], 1
    %12 = vsyncpa %s11, 0
    loop: start=0, step=1, limit=4
    $region2: #{tpu_custom_call.1} parent=1 // loop_pre_header
      _
    $region3: #{tpu_custom_call.1} parent=1 // loop_header
      %s14 = sphi 0, %s18
      %p15 = scmp.ge.s32.totalorder %s14, 4
      %s24 = sphi 0, %s26
      %s27 = sphi 0, %s24
      %s28 = sphi 0, %s27
      %s44 = sphi 0, %s28
      %s50 = sphi 0, %s52
      %s53 = sphi 0, %s50
      %s54 = sphi 0, %s53
      %s70 = sphi 0, %s54
      %s74 = sphi 0, %s74
      %s76 = sphi 0, %s74
      %s77 = sphi 0, %s76
      %s91 = sphi 0, %s77
      %s95 = sphi 0, %s95
      %s97 = sphi 0, %s95
      %s98 = sphi 0, %s97
      %s112 = sphi 0, %s98
      %s116 = sphi 0, %s116
      %s118 = sphi 0, %s116
      %s119 = sphi 0, %s118
      %s133 = sphi 0, %s119
      %s139 = sphi 0, %s141
      %s142 = sphi 0, %s139
      %s143 = sphi 0, %s142
      %s159 = sphi 0, %s143
    $region4: #{tpu_custom_call.1} parent=1 // loop_header_branch
      %17 = sbr.rel (%p15) target = $region8
    $region5: #{tpu_custom_call.1} parent=1 // loop_body
      %s19 = ssub.s32 %s14, 1
      %s20 = ssub.s32 %s14, 2
      %s21 = sadd.s32 %s14, 1
      %s22 = ssub.s32 %s14, %s21
      %p23 = scmp.eq.s32.totalorder %s22, 0
      %s25 = sadd.s32 %s24, 1
      %s26 = scalar_select %p23, %s24, %s25
      %p29 = pneg %p23
      %p30 = scmp.eq.s32.totalorder %s14, 1
      %p31 = por %p29, %p30
      %p32 = scmp.ne.s32.totalorder %s24, %s27
      %p33 = scmp.eq.s32.totalorder %s14, 0
      %p34 = por %p32, %p33
      %p35 = scmp.ne.s32.totalorder %s24, %s27
      %p36 = scmp.eq.s32.totalorder %s19, 1
      %p37 = por %p35, %p36
      %p38 = scmp.ne.s32.totalorder %s27, %s28
      %p39 = scmp.eq.s32.totalorder %s19, 0
      %p40 = por %p38, %p39
      %p41 = scmp.ne.s32.totalorder %s27, %s28
      %p42 = scmp.eq.s32.totalorder %s20, 1
      %p43 = por %p41, %p42
      %p45 = scmp.ne.s32.totalorder %s28, %s44
      %p46 = scmp.eq.s32.totalorder %s20, 0
      %p47 = por %p45, %p46
      %s48 = ssub.s32 %s14, %s21
      %p49 = scmp.eq.s32.totalorder %s48, 0
      %s51 = sadd.s32 %s50, 1
      %s52 = scalar_select %p49, %s50, %s51
      %p55 = pneg %p49
      %p56 = scmp.eq.s32.totalorder %s14, 1
      %p57 = por %p55, %p56
      %p58 = scmp.ne.s32.totalorder %s50, %s53
      %p59 = scmp.eq.s32.totalorder %s14, 0
      %p60 = por %p58, %p59
      %p61 = scmp.ne.s32.totalorder %s50, %s53
      %p62 = scmp.eq.s32.totalorder %s19, 1
      %p63 = por %p61, %p62
      %p64 = scmp.ne.s32.totalorder %s53, %s54
      %p65 = scmp.eq.s32.totalorder %s19, 0
      %p66 = por %p64, %p65
      %p67 = scmp.ne.s32.totalorder %s53, %s54
      %p68 = scmp.eq.s32.totalorder %s20, 1
      %p69 = por %p67, %p68
      %p71 = scmp.ne.s32.totalorder %s54, %s70
      %p72 = scmp.eq.s32.totalorder %s20, 0
      %p73 = por %p71, %p72
      %s75 = sadd.s32 %s74, 1
      %p78 = scmp.eq.s32.totalorder %s14, 1
      %p79 = scmp.ne.s32.totalorder %s74, %s76
      %p80 = scmp.eq.s32.totalorder %s14, 0
      %p81 = por %p79, %p80
      %p82 = scmp.ne.s32.totalorder %s74, %s76
      %p83 = scmp.eq.s32.totalorder %s19, 1
      %p84 = por %p82, %p83
      %p85 = scmp.ne.s32.totalorder %s76, %s77
      %p86 = scmp.eq.s32.totalorder %s19, 0
      %p87 = por %p85, %p86
      %p88 = scmp.ne.s32.totalorder %s76, %s77
      %p89 = scmp.eq.s32.totalorder %s20, 1
      %p90 = por %p88, %p89
      %p92 = scmp.ne.s32.totalorder %s77, %s91
      %p93 = scmp.eq.s32.totalorder %s20, 0
      %p94 = por %p92, %p93
      %s96 = sadd.s32 %s95, 1
      %p99 = scmp.eq.s32.totalorder %s14, 1
      %p100 = scmp.ne.s32.totalorder %s95, %s97
      %p101 = scmp.eq.s32.totalorder %s14, 0
      %p102 = por %p100, %p101
      %p103 = scmp.ne.s32.totalorder %s95, %s97
      %p104 = scmp.eq.s32.totalorder %s19, 1
      %p105 = por %p103, %p104
      %p106 = scmp.ne.s32.totalorder %s97, %s98
      %p107 = scmp.eq.s32.totalorder %s19, 0
      %p108 = por %p106, %p107
      %p109 = scmp.ne.s32.totalorder %s97, %s98
      %p110 = scmp.eq.s32.totalorder %s20, 1
      %p111 = por %p109, %p110
      %p113 = scmp.ne.s32.totalorder %s98, %s112
      %p114 = scmp.eq.s32.totalorder %s20, 0
      %p115 = por %p113, %p114
      %s117 = sadd.s32 %s116, 1
      %p120 = scmp.eq.s32.totalorder %s14, 1
      %p121 = scmp.ne.s32.totalorder %s116, %s118
      %p122 = scmp.eq.s32.totalorder %s14, 0
      %p123 = por %p121, %p122
      %p124 = scmp.ne.s32.totalorder %s116, %s118
      %p125 = scmp.eq.s32.totalorder %s19, 1
      %p126 = por %p124, %p125
      %p127 = scmp.ne.s32.totalorder %s118, %s119
      %p128 = scmp.eq.s32.totalorder %s19, 0
      %p129 = por %p127, %p128
      %p130 = scmp.ne.s32.totalorder %s118, %s119
      %p131 = scmp.eq.s32.totalorder %s20, 1
      %p132 = por %p130, %p131
      %p134 = scmp.ne.s32.totalorder %s119, %s133
      %p135 = scmp.eq.s32.totalorder %s20, 0
      %p136 = por %p134, %p135
      %s137 = ssub.s32 %s14, %s21
      %p138 = scmp.eq.s32.totalorder %s137, 0
      %s140 = sadd.s32 %s139, 1
      %s141 = scalar_select %p138, %s139, %s140
      %p144 = pneg %p138
      %p145 = scmp.eq.s32.totalorder %s14, 1
      %p146 = por %p144, %p145
      %p147 = scmp.ne.s32.totalorder %s139, %s142
      %p148 = scmp.eq.s32.totalorder %s14, 0
      %p149 = por %p147, %p148
      %p150 = scmp.ne.s32.totalorder %s139, %s142
      %p151 = scmp.eq.s32.totalorder %s19, 1
      %p152 = por %p150, %p151
      %p153 = scmp.ne.s32.totalorder %s142, %s143
      %p154 = scmp.eq.s32.totalorder %s19, 0
      %p155 = por %p153, %p154
      %p156 = scmp.ne.s32.totalorder %s142, %s143
      %p157 = scmp.eq.s32.totalorder %s20, 1
      %p158 = por %p156, %p157
      %p160 = scmp.ne.s32.totalorder %s143, %s159
      %p161 = scmp.eq.s32.totalorder %s20, 0
      %p162 = por %p160, %p161
      %p163 = scmp.le.s32.totalorder 1, %s14
      %p164 = scmp.lt.s32.totalorder %s14, 3
      %p165 = pnand %p163, %p164
      %p166 = pneg %p165
      // Predicated region
      $region9: #{tpu_custom_call.1} parent=5 // pred_check
        _
      $region10: #{tpu_custom_call.1} parent=5 // pred_check_branch
        %168 = sbr.rel (%p165) target = $region12
      $region11: #{tpu_custom_call.1} parent=5 // pred_region
        %s169 = ssub.s32 %s14, 1
        // Predicated region
        $region13: #{tpu_custom_call.1} parent=11 // pred_check
          %p170 = pneg %p87
        $region14: #{tpu_custom_call.1} parent=11 // pred_check_branch
          %172 = sbr.rel (%p170) target = $region16
        $region15: #{tpu_custom_call.1} parent=11 // pred_region
          _
        $region16: #{tpu_custom_call.1} parent=11 // pred_fallthru
          _
        // Predicated region
        $region17: #{tpu_custom_call.1} parent=11 // pred_check
          %p173 = pneg %p108
        $region18: #{tpu_custom_call.1} parent=11 // pred_check_branch
          %175 = sbr.rel (%p173) target = $region20
        $region19: #{tpu_custom_call.1} parent=11 // pred_region
          _
        $region20: #{tpu_custom_call.1} parent=11 // pred_fallthru
          _
        // Predicated region
        $region21: #{tpu_custom_call.1} parent=11 // pred_check
          %p176 = pneg %p129
        $region22: #{tpu_custom_call.1} parent=11 // pred_check_branch
          %178 = sbr.rel (%p176) target = $region24
        $region23: #{tpu_custom_call.1} parent=11 // pred_region
          _
        $region24: #{tpu_custom_call.1} parent=11 // pred_fallthru
          _
      $region12: #{tpu_custom_call.1} parent=5 // pred_fallthru
        _
      %p179 = scmp.lt.s32.totalorder %s14, 2
      // Predicated region
      $region25: #{tpu_custom_call.1} parent=5 // pred_check
        %p180 = pneg %p179
      $region26: #{tpu_custom_call.1} parent=5 // pred_check_branch
        %182 = sbr.rel (%p180) target = $region28
      $region27: #{tpu_custom_call.1} parent=5 // pred_region
        // Predicated region
        $region29: #{tpu_custom_call.1} parent=27 // pred_check
          %p183 = pneg %p34
        $region30: #{tpu_custom_call.1} parent=27 // pred_check_branch
          %185 = sbr.rel (%p183) target = $region32
        $region31: #{tpu_custom_call.1} parent=27 // pred_region
          %p186 = scmp.lt.s32.totalorder %s14, 1
          %s187 = scalar_select %p186, %s14, 1
          %s188 = smul.addr %s187, 2
          %s189 = smul.addr %s188, 8
          %s190 = scalar_lea.vmem %s0, %s189
        $region32: #{tpu_custom_call.1} parent=27 // pred_fallthru
          _
        // Predicated region
        $region33: #{tpu_custom_call.1} parent=27 // pred_check
          %p191 = pneg %p60
        $region34: #{tpu_custom_call.1} parent=27 // pred_check_branch
          %193 = sbr.rel (%p191) target = $region36
        $region35: #{tpu_custom_call.1} parent=27 // pred_region
          %p194 = scmp.lt.s32.totalorder %s14, 1
          %s195 = scalar_select %p194, %s14, 1
          %s196 = smul.addr %s195, 12
          %s197 = smul.addr %s196, 8
          %s198 = scalar_lea.vmem %s1, %s197
        $region36: #{tpu_custom_call.1} parent=27 // pred_fallthru
          _
      $region28: #{tpu_custom_call.1} parent=5 // pred_fallthru
        _
      %p199 = scmp.le.s32.totalorder 1, %s14
      %p200 = scmp.lt.s32.totalorder %s14, 3
      %p201 = pnand %p199, %p200
      %p202 = pneg %p201
      // Predicated region
      $region37: #{tpu_custom_call.1} parent=5 // pred_check
        _
      $region38: #{tpu_custom_call.1} parent=5 // pred_check_branch
        %204 = sbr.rel (%p201) target = $region40
      $region39: #{tpu_custom_call.1} parent=5 // pred_region
        %s205 = ssub.s32 %s14, 1
        %p206 = scmp.lt.s32.totalorder %s19, 1
        %s207 = scalar_select %p206, %s19, 1
        %s208 = smul.addr %s207, 2
        %s209 = smul.addr %s208, 8
        %s210 = scalar_lea.vmem %s0, %s209
        %p211 = pneg %p40
        %p212 = pneg %p37
        %p213 = scmp.lt.s32.totalorder %s19, 1
        %s214 = scalar_select %p213, %s19, 1
        %s215 = smul.addr %s214, 12
        %s216 = smul.addr %s215, 8
        %s217 = scalar_lea.vmem %s1, %s216
        %p218 = pneg %p66
        %p219 = pneg %p63
        %p220 = pneg %p87
        %p221 = pneg %p84
        %p222 = pneg %p108
        %p223 = pneg %p105
        %p224 = pneg %p129
        %p225 = pneg %p126
        %p226 = pneg %p155
        %p227 = pneg %p152
        %s228 = sand.u32 %s142, 1
        %s229 = scalar_lea.sflag [#allocation3], %s228
        %s230 = sand.u32 %s142, 1
        %s231 = smul.addr %s230, 16
        %s232 = scalar_lea.vmem [#allocation2], %s231
        %p233 = scmp.lt.s32.totalorder %s19, 1
        %s234 = scalar_select %p233, %s19, 1
        %s235 = smul.addr %s234, 2
        %s236 = smul.addr %s235, 8
        %s237 = scalar_lea.vmem %s0, %s236
        %p238 = scmp.lt.s32.totalorder %s19, 1
        %s239 = scalar_select %p238, %s19, 1
        %s240 = smul.addr %s239, 12
        %s241 = smul.addr %s240, 8
        %s242 = scalar_lea.vmem %s1, %s241
        %v243 = vld [vmem:[%s237] sm:$0xff]
        %v244 = vld [vmem:[%s237 + $0x8] sm:$0xff]
        %v245 = vld [vmem:[%s242] sm:$0xff]
        %v246 = vld [vmem:[%s242 + $0x8] sm:$0xff]
        %v247 = vld [vmem:[%s242 + $0x10] sm:$0xff]
        %v248 = vld [vmem:[%s242 + $0x18] sm:$0xff]
        %v249 = vld [vmem:[%s242 + $0x20] sm:$0xff]
        %v250 = vld [vmem:[%s242 + $0x28] sm:$0xff]
        %v251 = vld [vmem:[%s242 + $0x30] sm:$0xff]
        %v252 = vld [vmem:[%s242 + $0x38] sm:$0xff]
        %v253 = vld [vmem:[%s242 + $0x40] sm:$0xff]
        %v254 = vld [vmem:[%s242 + $0x48] sm:$0xff]
        %v255 = vld [vmem:[%s242 + $0x50] sm:$0xff]
        %v256 = vld [vmem:[%s242 + $0x58] sm:$0xff]
        %v257 = vld [vmem:[%s2] sm:$0xff]
        %vm258 = vcmask 64512
        %v260 = vsel %vm258, %v243, 0
        %v263 = vsel %vm258, %v244, 0
        %265 = vmatprep.subr.mxu0 0.0
        %266 = vmatpush1.msra.mxu0 %v257
        %267 = vmatprep.subr.mxu0 0.0
        %268 = vmatpush1.msra.mxu0 0.0
        %269 = vmatprep.subr.mxu0 0.0
        %270 = vmatpush1.msra.mxu0 0.0
        %271 = vmatprep.subr.mxu0 0.0
        %272 = vmatpush1.msra.mxu0 0.0
        %273 = vmatprep.subr.mxu0 0.0
        %274 = vmatpush1.msra.mxu0 0.0
        %275 = vmatprep.subr.mxu0 0.0
        %276 = vmatpush1.msra.mxu0 0.0
        %277 = vmatprep.subr.mxu0 0.0
        %278 = vmatpush1.msra.mxu0 0.0
        %279 = vmatprep.subr.mxu0 0.0
        %280 = vmatpush1.msra.mxu0 0.0
        %281 = vmatprep.subr.mxu0 0.0
        %282 = vmatpush1.msra.mxu0 0.0
        %283 = vmatprep.subr.mxu0 0.0
        %284 = vmatpush1.msra.mxu0 0.0
        %285 = vmatprep.subr.mxu0 0.0
        %286 = vmatpush1.msra.mxu0 0.0
        %287 = vmatprep.subr.mxu0 0.0
        %288 = vmatpush1.msra.mxu0 0.0
        %289 = vmatprep.subr.mxu0 0.0
        %290 = vmatpush1.msra.mxu0 0.0
        %291 = vmatprep.subr.mxu0 0.0
        %292 = vmatpush1.msra.mxu0 0.0
        %293 = vmatprep.subr.mxu0 0.0
        %294 = vmatpush1.msra.mxu0 0.0
        %295 = vmatprep.subr.mxu0 0.0
        %296 = vmatpush1.msra.mxu0 0.0
        %297 = vmatprep.subr.mxu0 0.0
        %298 = vmatpush1.msra.mxu0 0.0
        %299 = vmatprep.subr.mxu0 0.0
        %300 = vmatpush1.msra.mxu0 0.0
        %301 = vmatprep.subr.mxu0 0.0
        %302 = vmatpush1.msra.mxu0 0.0
        %303 = vmatprep.subr.mxu0 0.0
        %304 = vmatpush1.msra.mxu0 0.0
        %305 = vmatprep.subr.mxu0 0.0
        %306 = vmatpush1.msra.mxu0 0.0
        %307 = vmatprep.subr.mxu0 0.0
        %308 = vmatpush1.msra.mxu0 0.0
        %309 = vmatprep.subr.mxu0 0.0
        %310 = vmatpush1.msra.mxu0 0.0
        %311 = vmatprep.subr.mxu0 0.0
        %312 = vmatpush1.msra.mxu0 0.0
        %313 = vmatprep.subr.mxu0 0.0
        %314 = vmatpush1.msra.mxu0 0.0
        %315 = vmatprep.subr.mxu0 0.0
        %316 = vmatpush1.msra.mxu0 0.0
        %317 = vmatprep.subr.mxu0 0.0
        %318 = vmatpush1.msra.mxu0 0.0
        %319 = vmatprep.subr.mxu0 0.0
        %320 = vmatpush1.msra.mxu0 0.0
        %321 = vmatprep.subr.mxu0 0.0
        %322 = vmatpush1.msra.mxu0 0.0
        %323 = vmatprep.subr.mxu0 0.0
        %324 = vmatpush1.msra.mxu0 0.0
        %325 = vmatprep.subr.mxu0 0.0
        %326 = vmatpush1.msra.mxu0 0.0
        %327 = vmatprep.subr.mxu0 0.0
        %328 = vmatpush1.msra.mxu0 0.0
        %329 = vmatprep.mubr.f32.mxu0 0.0
        %330 = vmatmul.mubr.f32.gmra.mrb[0].mxu0 %v260
        %v331 = vpop.f32.mrb[0].mxu0
        %v332 = vadd.f32 0.0, %v331
        %v333 = vpop.f32.mrb[0].mxu0
        %334 = vmatprep.mubr.f32.mxu0 0.0
        %335 = vmatmul.mubr.f32.gmra.mrb[0].mxu0 %v263
        %v336 = vpop.f32.mrb[0].mxu0
        %v337 = vadd.f32 0.0, %v336
        %v338 = vpop.f32.mrb[0].mxu0
        %339 = vdwg.mxu0
        %vm340 = vcmask 130048
        %v342 = vsel %vm340, %v245, 0
        %v345 = vsel %vm340, %v246, 0
        %v348 = vsel %vm340, %v247, 0
        %v351 = vsel %vm340, %v248, 0
        %v354 = vsel %vm340, %v249, 0
        %v357 = vsel %vm340, %v250, 0
        %v360 = vsel %vm340, %v251, 0
        %v363 = vsel %vm340, %v252, 0
        %v366 = vsel %vm340, %v253, 0
        %v369 = vsel %vm340, %v254, 0
        %v372 = vsel %vm340, %v255, 0
        %v375 = vsel %vm340, %v256, 0
        %377 = vmatprep.subr.mxu0 0.0
        %378 = vmatpush1.msra.mxu0 %v332
        %379 = vmatprep.subr.mxu0 0.0
        %380 = vmatpush1.msra.mxu0 %v337
        %381 = vmatprep.subr.mxu0 0.0
        %382 = vmatpush1.msra.mxu0 0.0
        %383 = vmatprep.subr.mxu0 0.0
        %384 = vmatpush1.msra.mxu0 0.0
        %385 = vmatprep.subr.mxu0 0.0
        %386 = vmatpush1.msra.mxu0 0.0
        %387 = vmatprep.subr.mxu0 0.0
        %388 = vmatpush1.msra.mxu0 0.0
        %389 = vmatprep.subr.mxu0 0.0
        %390 = vmatpush1.msra.mxu0 0.0
        %391 = vmatprep.subr.mxu0 0.0
        %392 = vmatpush1.msra.mxu0 0.0
        %393 = vmatprep.subr.mxu0 0.0
        %394 = vmatpush1.msra.mxu0 0.0
        %395 = vmatprep.subr.mxu0 0.0
        %396 = vmatpush1.msra.mxu0 0.0
        %397 = vmatprep.subr.mxu0 0.0
        %398 = vmatpush1.msra.mxu0 0.0
        %399 = vmatprep.subr.mxu0 0.0
        %400 = vmatpush1.msra.mxu0 0.0
        %401 = vmatprep.subr.mxu0 0.0
        %402 = vmatpush1.msra.mxu0 0.0
        %403 = vmatprep.subr.mxu0 0.0
        %404 = vmatpush1.msra.mxu0 0.0
        %405 = vmatprep.subr.mxu0 0.0
        %406 = vmatpush1.msra.mxu0 0.0
        %407 = vmatprep.subr.mxu0 0.0
        %408 = vmatpush1.msra.mxu0 0.0
        %409 = vmatprep.subr.mxu0 0.0
        %410 = vmatpush1.msra.mxu0 0.0
        %411 = vmatprep.subr.mxu0 0.0
        %412 = vmatpush1.msra.mxu0 0.0
        %413 = vmatprep.subr.mxu0 0.0
        %414 = vmatpush1.msra.mxu0 0.0
        %415 = vmatprep.subr.mxu0 0.0
        %416 = vmatpush1.msra.mxu0 0.0
        %417 = vmatprep.subr.mxu0 0.0
        %418 = vmatpush1.msra.mxu0 0.0
        %419 = vmatprep.subr.mxu0 0.0
        %420 = vmatpush1.msra.mxu0 0.0
        %421 = vmatprep.subr.mxu0 0.0
        %422 = vmatpush1.msra.mxu0 0.0
        %423 = vmatprep.subr.mxu0 0.0
        %424 = vmatpush1.msra.mxu0 0.0
        %425 = vmatprep.subr.mxu0 0.0
        %426 = vmatpush1.msra.mxu0 0.0
        %427 = vmatprep.subr.mxu0 0.0
        %428 = vmatpush1.msra.mxu0 0.0
        %429 = vmatprep.subr.mxu0 0.0
        %430 = vmatpush1.msra.mxu0 0.0
        %431 = vmatprep.subr.mxu0 0.0
        %432 = vmatpush1.msra.mxu0 0.0
        %433 = vmatprep.subr.mxu0 0.0
        %434 = vmatpush1.msra.mxu0 0.0
        %435 = vmatprep.subr.mxu0 0.0
        %436 = vmatpush1.msra.mxu0 0.0
        %437 = vmatprep.subr.mxu0 0.0
        %438 = vmatpush1.msra.mxu0 0.0
        %439 = vmatprep.subr.mxu0 0.0
        %440 = vmatpush1.msra.mxu0 0.0
        %441 = vmatprep.mubr.f32.mxu0 0.0
        %442 = vmatmul.mubr.f32.gmra.mrb[0].mxu0 %v342
        %v443 = vpop.f32.mrb[0].mxu0
        %v444 = vadd.f32 0.0, %v443
        %v445 = vpop.f32.mrb[0].mxu0
        %446 = vmatprep.mubr.f32.mxu0 0.0
        %447 = vmatmul.mubr.f32.gmra.mrb[0].mxu0 %v345
        %v448 = vpop.f32.mrb[0].mxu0
        %v449 = vadd.f32 0.0, %v448
        %v450 = vpop.f32.mrb[0].mxu0
        %451 = vmatprep.mubr.f32.mxu0 0.0
        %452 = vmatmul.mubr.f32.gmra.mrb[0].mxu0 %v348
        %v453 = vpop.f32.mrb[0].mxu0
        %v454 = vadd.f32 0.0, %v453
        %v455 = vpop.f32.mrb[0].mxu0
        %456 = vmatprep.mubr.f32.mxu0 0.0
        %457 = vmatmul.mubr.f32.gmra.mrb[0].mxu0 %v351
        %v458 = vpop.f32.mrb[0].mxu0
        %v459 = vadd.f32 0.0, %v458
        %v460 = vpop.f32.mrb[0].mxu0
        %461 = vmatprep.mubr.f32.mxu0 0.0
        %462 = vmatmul.mubr.f32.gmra.mrb[0].mxu0 %v354
        %v463 = vpop.f32.mrb[0].mxu0
        %v464 = vadd.f32 0.0, %v463
        %v465 = vpop.f32.mrb[0].mxu0
        %466 = vmatprep.mubr.f32.mxu0 0.0
        %467 = vmatmul.mubr.f32.gmra.mrb[0].mxu0 %v357
        %v468 = vpop.f32.mrb[0].mxu0
        %v469 = vadd.f32 0.0, %v468
        %v470 = vpop.f32.mrb[0].mxu0
        %471 = vmatprep.mubr.f32.mxu0 0.0
        %472 = vmatmul.mubr.f32.gmra.mrb[0].mxu0 %v360
        %v473 = vpop.f32.mrb[0].mxu0
        %v474 = vadd.f32 0.0, %v473
        %v475 = vpop.f32.mrb[0].mxu0
        %476 = vmatprep.mubr.f32.mxu0 0.0
        %477 = vmatmul.mubr.f32.gmra.mrb[0].mxu0 %v363
        %v478 = vpop.f32.mrb[0].mxu0
        %v479 = vadd.f32 0.0, %v478
        %v480 = vpop.f32.mrb[0].mxu0
        %481 = vmatprep.mubr.f32.mxu0 0.0
        %482 = vmatmul.mubr.f32.gmra.mrb[0].mxu0 %v366
        %v483 = vpop.f32.mrb[0].mxu0
        %v484 = vadd.f32 0.0, %v483
        %v485 = vpop.f32.mrb[0].mxu0
        %486 = vmatprep.mubr.f32.mxu0 0.0
        %487 = vmatmul.mubr.f32.gmra.mrb[0].mxu0 %v369
        %v488 = vpop.f32.mrb[0].mxu0
        %v489 = vadd.f32 0.0, %v488
        %v490 = vpop.f32.mrb[0].mxu0
        %491 = vmatprep.mubr.f32.mxu0 0.0
        %492 = vmatmul.mubr.f32.gmra.mrb[0].mxu0 %v372
        %v493 = vpop.f32.mrb[0].mxu0
        %v494 = vadd.f32 0.0, %v493
        %v495 = vpop.f32.mrb[0].mxu0
        %496 = vmatprep.mubr.f32.mxu0 0.0
        %497 = vmatmul.mubr.f32.gmra.mrb[0].mxu0 %v375
        %v498 = vpop.f32.mrb[0].mxu0
        %v499 = vadd.f32 0.0, %v498
        %v500 = vpop.f32.mrb[0].mxu0
        %501 = vdwg.mxu0
        %v502 = vlaneseq
        %v503 = vand.u32 %v502, 127
        %vm504 = vcmp.ge.s32.totalorder %v503, 16
        %511 = vrot.lane.b32.xlu0 %v474, 96
        %v512 = vpop.permute.xlu0 %511
        %513 = vrot.lane.b32.xlu0 %v479, 96
        %v514 = vpop.permute.xlu0 %513
        %515 = vrot.lane.b32.xlu0 %v484, 96
        %v516 = vpop.permute.xlu0 %515
        %517 = vrot.lane.b32.xlu0 %v489, 96
        %v518 = vpop.permute.xlu0 %517
        %519 = vrot.lane.b32.xlu0 %v494, 96
        %v520 = vpop.permute.xlu0 %519
        %521 = vrot.lane.b32.xlu0 %v499, 96
        %v522 = vpop.permute.xlu0 %521
        %v529 = vmul.f32 %v444, %v512
        %v530 = vmul.f32 %v449, %v514
        %v531 = vmul.f32 %v454, %v516
        %v532 = vmul.f32 %v459, %v518
        %v533 = vmul.f32 %v464, %v520
        %v534 = vmul.f32 %v469, %v522
        %v535 = vsel %vm504, 0.0, %v529
        %v536 = vsel %vm504, 0.0, %v530
        %v537 = vsel %vm504, 0.0, %v531
        %v538 = vsel %vm504, 0.0, %v532
        %v539 = vsel %vm504, 0.0, %v533
        %v540 = vsel %vm504, 0.0, %v534
        %vm541 = vcmask 261120
        %v542 = vsel %vm541, %v535, 0.0
        %543 = vadd.xlane.f32.xlu0 %v542
        %v544 = vpop.xlane.xlu0 %543
        %v545 = vsel %vm541, %v536, 0.0
        %546 = vadd.xlane.f32.xlu0 %v545
        %v547 = vpop.xlane.xlu0 %546
        %v548 = vsel %vm541, %v537, 0.0
        %549 = vadd.xlane.f32.xlu0 %v548
        %v550 = vpop.xlane.xlu0 %549
        %v551 = vsel %vm541, %v538, 0.0
        %552 = vadd.xlane.f32.xlu0 %v551
        %v553 = vpop.xlane.xlu0 %552
        %v554 = vsel %vm541, %v539, 0.0
        %555 = vadd.xlane.f32.xlu0 %v554
        %v556 = vpop.xlane.xlu0 %555
        %v557 = vsel %vm541, %v540, 0.0
        %558 = vadd.xlane.f32.xlu0 %v557
        %v559 = vpop.xlane.xlu0 %558
        %v560 = vsel %vm504, %v529, 0.0
        %v561 = vsel %vm504, %v530, 0.0
        %v562 = vsel %vm504, %v531, 0.0
        %v563 = vsel %vm504, %v532, 0.0
        %v564 = vsel %vm504, %v533, 0.0
        %v565 = vsel %vm504, %v534, 0.0
        %v566 = vsel %vm541, %v560, 0.0
        %567 = vadd.xlane.f32.xlu0 %v566
        %v568 = vpop.xlane.xlu0 %567
        %v569 = vsel %vm541, %v561, 0.0
        %570 = vadd.xlane.f32.xlu0 %v569
        %v571 = vpop.xlane.xlu0 %570
        %v572 = vsel %vm541, %v562, 0.0
        %573 = vadd.xlane.f32.xlu0 %v572
        %v574 = vpop.xlane.xlu0 %573
        %v575 = vsel %vm541, %v563, 0.0
        %576 = vadd.xlane.f32.xlu0 %v575
        %v577 = vpop.xlane.xlu0 %576
        %v578 = vsel %vm541, %v564, 0.0
        %579 = vadd.xlane.f32.xlu0 %v578
        %v580 = vpop.xlane.xlu0 %579
        %v581 = vsel %vm541, %v565, 0.0
        %582 = vadd.xlane.f32.xlu0 %v581
        %v583 = vpop.xlane.xlu0 %582
        %v584 = vsel %vm504, %v568, %v544
        %v585 = vsel %vm504, %v571, %v547
        %v586 = vsel %vm504, %v574, %v550
        %v587 = vsel %vm504, %v577, %v553
        %v588 = vsel %vm504, %v580, %v556
        %v589 = vsel %vm504, %v583, %v559
        %v590 = vmul.f32 %v584, 0.25
        %v591 = vmul.f32 %v585, 0.25
        %v592 = vmul.f32 %v586, 0.25
        %v593 = vmul.f32 %v587, 0.25
        %v594 = vmul.f32 %v588, 0.25
        %v595 = vmul.f32 %v589, 0.25
        %v596 = vsel %vm541, %v590, -inf
        %v597 = vsel %vm541, %v591, -inf
        %v598 = vsel %vm541, %v592, -inf
        %v599 = vsel %vm541, %v593, -inf
        %v600 = vsel %vm541, %v594, -inf
        %v601 = vmax.f32 %v596, %v600
        %v602 = vsel %vm541, %v595, -inf
        %v603 = vmax.f32 %v597, %v602
        %v604 = vmax.f32 %v601, %v603
        %v605 = vmax.f32 %v598, %v599
        %v606 = vmax.f32 %v604, %v605
        %v607 = vrot.slane %v606, 4
        %v608 = vmax.f32 %v606, %v607
        %v609 = vrot.slane %v608, 2
        %v610 = vmax.f32 %v608, %v609
        %v611 = vrot.slane %v610, 1
        %v612 = vmax.f32 %v610, %v611
        %v613 = vsub.f32 %v590, %v612
        %v614 = vsub.f32 %v591, %v612
        %v615 = vsub.f32 %v592, %v612
        %v616 = vsub.f32 %v593, %v612
        %v617 = vsub.f32 %v594, %v612
        %v618 = vsub.f32 %v595, %v612
        %v619 = vmul.f32 %v613, 1.442695
        %v620 = vpow.pop %v619
        %v621 = vmul.f32 %v614, 1.442695
        %v622 = vpow.pop %v621
        %v623 = vmul.f32 %v615, 1.442695
        %v624 = vpow.pop %v623
        %v625 = vmul.f32 %v616, 1.442695
        %v626 = vpow.pop %v625
        %v627 = vmul.f32 %v617, 1.442695
        %v628 = vpow.pop %v627
        %v629 = vmul.f32 %v618, 1.442695
        %v630 = vpow.pop %v629
        %v631 = vsel %vm541, %v620, 0.0
        %v632 = vsel %vm541, %v622, 0.0
        %v633 = vadd.f32 %v631, %v632
        %v634 = vsel %vm541, %v624, 0.0
        %v635 = vadd.f32 %v633, %v634
        %v636 = vsel %vm541, %v626, 0.0
        %v637 = vadd.f32 %v635, %v636
        %v638 = vsel %vm541, %v628, 0.0
        %v639 = vadd.f32 %v637, %v638
        %v640 = vsel %vm541, %v630, 0.0
        %v641 = vadd.f32 %v639, %v640
        %v642 = vrot.slane %v641, 4
        %v643 = vadd.f32 %v641, %v642
        %v644 = vrot.slane %v643, 2
        %v645 = vadd.f32 %v643, %v644
        %v646 = vrot.slane %v645, 1
        %v647 = vadd.f32 %v645, %v646
        %v648 = vrcp.pop %v647
        %v649 = vmul.f32 %v620, %v648
        %v650 = vmul.f32 %v622, %v648
        %v651 = vmul.f32 %v624, %v648
        %v652 = vmul.f32 %v626, %v648
        %v653 = vmul.f32 %v628, %v648
        %v654 = vmul.f32 %v630, %v648
        %v655 = vmul.f32 %v444, %v649
        %v656 = vmul.f32 %v449, %v650
        %v657 = vmul.f32 %v454, %v651
        %v658 = vmul.f32 %v459, %v652
        %v659 = vmul.f32 %v464, %v653
        %v660 = vmul.f32 %v469, %v654
        %v661 = vld [vmem:[%s3] sm:$0xf]
        %662 = vxpose.xlu0.b32.start [1/16] %v251, 128
        %663 = vxpose.xlu0.b32.cont [2/16] %v252, 128
        %664 = vxpose.xlu0.b32.cont [3/16] %v253, 128
        %665 = vxpose.xlu0.b32.cont [4/16] %v254, 128
        %666 = vxpose.xlu0.b32.cont [5/16] %v255, 128
        %667 = vxpose.xlu0.b32.cont [6/16] %v256, 128
        %668 = vxpose.xlu0.b32.cont [7/16] 0.0, 128
        %669 = vxpose.xlu0.b32.cont [8/16] 0.0, 128
        %670 = vxpose.xlu0.b32.cont [9/16] 0.0, 128
        %671 = vxpose.xlu0.b32.cont [10/16] 0.0, 128
        %672 = vxpose.xlu0.b32.cont [11/16] 0.0, 128
        %673 = vxpose.xlu0.b32.cont [12/16] 0.0, 128
        %674 = vxpose.xlu0.b32.cont [13/16] 0.0, 128
        %675 = vxpose.xlu0.b32.cont [14/16] 0.0, 128
        %676 = vxpose.xlu0.b32.cont [15/16] 0.0, 128
        %677 = vxpose.xlu0.b32.end [16/16] 0.0, 128
        %v678 = vpop.trf.xlu0
        %v679 = vpop.trf.xlu0
        %v680 = vpop.trf.xlu0
        %v681 = vpop.trf.xlu0
        %v682 = vpop.trf.xlu0
        %v683 = vpop.trf.xlu0
        %v684 = vpop.trf.xlu0
        %v685 = vpop.trf.xlu0
        %v686 = vpop.trf.xlu0
        %v687 = vpop.trf.xlu0
        %v688 = vpop.trf.xlu0
        %v689 = vpop.trf.xlu0
        %v690 = vpop.trf.xlu0
        %v691 = vpop.trf.xlu0
        %v692 = vpop.trf.xlu0
        %v693 = vpop.trf.xlu0
        %696 = vrot.lane.b32.xlu0 %v332, 64
        %v697 = vpop.permute.xlu0 %696
        %698 = vrot.lane.b32.xlu0 %v337, 64
        %v699 = vpop.permute.xlu0 %698
        %vm702 = vcmask 392192
        %v704 = vsel %vm702, %v678, 0
        %v707 = vsel %vm702, %v679, 0
        %709 = vmatprep.subr.mxu0 0.0
        %710 = vmatpush1.msra.mxu0 %v655
        %711 = vmatprep.subr.mxu0 0.0
        %712 = vmatpush1.msra.mxu0 %v656
        %713 = vmatprep.subr.mxu0 0.0
        %714 = vmatpush1.msra.mxu0 %v657
        %715 = vmatprep.subr.mxu0 0.0
        %716 = vmatpush1.msra.mxu0 %v658
        %717 = vmatprep.subr.mxu0 0.0
        %718 = vmatpush1.msra.mxu0 %v659
        %719 = vmatprep.subr.mxu0 0.0
        %720 = vmatpush1.msra.mxu0 %v660
        %721 = vmatprep.subr.mxu0 0.0
        %722 = vmatpush1.msra.mxu0 0.0
        %723 = vmatprep.subr.mxu0 0.0
        %724 = vmatpush1.msra.mxu0 0.0
        %725 = vmatprep.subr.mxu0 0.0
        %726 = vmatpush1.msra.mxu0 0.0
        %727 = vmatprep.subr.mxu0 0.0
        %728 = vmatpush1.msra.mxu0 0.0
        %729 = vmatprep.subr.mxu0 0.0
        %730 = vmatpush1.msra.mxu0 0.0
        %731 = vmatprep.subr.mxu0 0.0
        %732 = vmatpush1.msra.mxu0 0.0
        %733 = vmatprep.subr.mxu0 0.0
        %734 = vmatpush1.msra.mxu0 0.0
        %735 = vmatprep.subr.mxu0 0.0
        %736 = vmatpush1.msra.mxu0 0.0
        %737 = vmatprep.subr.mxu0 0.0
        %738 = vmatpush1.msra.mxu0 0.0
        %739 = vmatprep.subr.mxu0 0.0
        %740 = vmatpush1.msra.mxu0 0.0
        %741 = vmatprep.subr.mxu0 0.0
        %742 = vmatpush1.msra.mxu0 0.0
        %743 = vmatprep.subr.mxu0 0.0
        %744 = vmatpush1.msra.mxu0 0.0
        %745 = vmatprep.subr.mxu0 0.0
        %746 = vmatpush1.msra.mxu0 0.0
        %747 = vmatprep.subr.mxu0 0.0
        %748 = vmatpush1.msra.mxu0 0.0
        %749 = vmatprep.subr.mxu0 0.0
        %750 = vmatpush1.msra.mxu0 0.0
        %751 = vmatprep.subr.mxu0 0.0
        %752 = vmatpush1.msra.mxu0 0.0
        %753 = vmatprep.subr.mxu0 0.0
        %754 = vmatpush1.msra.mxu0 0.0
        %755 = vmatprep.subr.mxu0 0.0
        %756 = vmatpush1.msra.mxu0 0.0
        %757 = vmatprep.subr.mxu0 0.0
        %758 = vmatpush1.msra.mxu0 0.0
        %759 = vmatprep.subr.mxu0 0.0
        %760 = vmatpush1.msra.mxu0 0.0
        %761 = vmatprep.subr.mxu0 0.0
        %762 = vmatpush1.msra.mxu0 0.0
        %763 = vmatprep.subr.mxu0 0.0
        %764 = vmatpush1.msra.mxu0 0.0
        %765 = vmatprep.subr.mxu0 0.0
        %766 = vmatpush1.msra.mxu0 0.0
        %767 = vmatprep.subr.mxu0 0.0
        %768 = vmatpush1.msra.mxu0 0.0
        %769 = vmatprep.subr.mxu0 0.0
        %770 = vmatpush1.msra.mxu0 0.0
        %771 = vmatprep.subr.mxu0 0.0
        %772 = vmatpush1.msra.mxu0 0.0
        %773 = vmatprep.mubr.f32.mxu0 0.0
        %774 = vmatmul.mubr.f32.gmra.mrb[0].mxu0 %v704
        %v775 = vpop.f32.mrb[0].mxu0
        %v776 = vadd.f32 %v697, %v775
        %v777 = vpop.f32.mrb[0].mxu0
        %778 = vmatprep.mubr.f32.mxu0 0.0
        %779 = vmatmul.mubr.f32.gmra.mrb[0].mxu0 %v707
        %v780 = vpop.f32.mrb[0].mxu0
        %v781 = vadd.f32 %v699, %v780
        %v782 = vpop.f32.mrb[0].mxu0
        %783 = vdwg.mxu0
        %v784 = vlaneseq
        %v785 = vshrl.u32 %v784, 7
        %v786 = vsub.s32 0, %v785
        %v787 = vrot.slane %v661, %v786
        %v788 = vadd.f32 %v776, %v787
        %v789 = vadd.f32 %v781, %v787
        %v790 = vsel %vm541, %v788, 0.0
        %791 = vadd.xlane.f32.xlu0 %v790
        %v792 = vpop.xlane.xlu0 %791
        %v793 = vsel %vm541, %v789, 0.0
        %794 = vadd.xlane.f32.xlu0 %v793
        %v795 = vpop.xlane.xlu0 %794
        %v796 = vrcp.pop 32.0
        %v797 = vmul.f32 %v792, %v796
        %v798 = vmul.f32 %v795, %v796
        %v799 = vsub.f32 %v788, %v797
        %v800 = vsub.f32 %v789, %v798
        %v801 = vmul.f32 %v799, %v799
        %v802 = vmul.f32 %v800, %v800
        %v803 = vsel %vm541, %v801, 0.0
        %804 = vadd.xlane.f32.xlu0 %v803
        %v805 = vpop.xlane.xlu0 %804
        %v806 = vsel %vm541, %v802, 0.0
        %807 = vadd.xlane.f32.xlu0 %v806
        %v808 = vpop.xlane.xlu0 %807
        %v809 = vmul.f32 %v805, %v796
        %v810 = vmul.f32 %v808, %v796
        %v811 = vadd.f32 %v809, 1e-05
        %v812 = vadd.f32 %v810, 1e-05
        %v813 = vrsqrt.pop %v811
        %v814 = vrsqrt.pop %v812
        %v815 = vmul.f32 %v799, %v813
        %v816 = vmul.f32 %v800, %v814
        %v817 = vlaneseq
        %v818 = vshrl.u32 %v817, 7
        %v819 = vsub.s32 1, %v818
        %v820 = vrot.slane %v661, %v819
        %v821 = vmul.f32 %v815, %v820
        %v822 = vmul.f32 %v816, %v820
        %v823 = vlaneseq
        %v824 = vshrl.u32 %v823, 7
        %v825 = vsub.s32 2, %v824
        %v826 = vrot.slane %v661, %v825
        %v827 = vadd.f32 %v821, %v826
        %v828 = vadd.f32 %v822, %v826
        %v829 = vxor.u32 %v827, 2147483648
        %v830 = vxor.u32 %v828, 2147483648
        %v831 = vmul.f32 %v829, 1.442695
        %v832 = vpow.pop %v831
        %v833 = vmul.f32 %v830, 1.442695
        %v834 = vpow.pop %v833
        %v835 = vadd.f32 %v832, 1.0
        %v836 = vadd.f32 %v834, 1.0
        %v837 = vrcp.pop %v835
        %v838 = vmul.f32 1.0, %v837
        %v839 = vrcp.pop %v836
        %v840 = vmul.f32 1.0, %v839
        %v841 = vmul.f32 %v827, %v838
        %v842 = vmul.f32 %v828, %v840
        %843 = vrot.lane.b32.xlu0 %v332, 32
        %v844 = vpop.permute.xlu0 %843
        %845 = vrot.lane.b32.xlu0 %v337, 32
        %v846 = vpop.permute.xlu0 %845
        %v849 = vadd.f32 %v841, %v844
        %v850 = vadd.f32 %v842, %v846
        %v851 = vlaneseq
        %v852 = vshrl.u32 %v851, 7
        %v853 = vsub.s32 3, %v852
        %v854 = vrot.slane %v661, %v853
        %v855 = vadd.f32 %v849, %v854
        %v856 = vadd.f32 %v850, %v854
        %v857 = vld [vmem:[%s4] sm:$0xff]
        %v858 = vld [vmem:[%s4 + $0x8] sm:$0xff]
        %v859 = vld [vmem:[%s4 + $0x10] sm:$0xff]
        %v860 = vld [vmem:[%s4 + $0x18] sm:$0xff]
        %v861 = vld [vmem:[%s4 + $0x20] sm:$0x1]
        %v862 = vlaneseq
        %v863 = vshrl.u32 %v862, 7
        %v864 = vsub.s32 0, %v863
        %v865 = vrot.slane %v861, %v864
        %v867 = vsel %vm541, %v855, 0
        %v870 = vsel %vm541, %v856, 0
        %872 = vmatprep.subr.mxu0 0.0
        %873 = vmatpush1.msra.mxu0 %v857
        %874 = vmatprep.subr.mxu0 0.0
        %875 = vmatpush1.msra.mxu0 %v858
        %876 = vmatprep.subr.mxu0 0.0
        %877 = vmatpush1.msra.mxu0 %v859
        %878 = vmatprep.subr.mxu0 0.0
        %879 = vmatpush1.msra.mxu0 %v860
        %880 = vmatprep.subr.mxu0 0.0
        %881 = vmatpush1.msra.mxu0 0.0
        %882 = vmatprep.subr.mxu0 0.0
        %883 = vmatpush1.msra.mxu0 0.0
        %884 = vmatprep.subr.mxu0 0.0
        %885 = vmatpush1.msra.mxu0 0.0
        %886 = vmatprep.subr.mxu0 0.0
        %887 = vmatpush1.msra.mxu0 0.0
        %888 = vmatprep.subr.mxu0 0.0
        %889 = vmatpush1.msra.mxu0 0.0
        %890 = vmatprep.subr.mxu0 0.0
        %891 = vmatpush1.msra.mxu0 0.0
        %892 = vmatprep.subr.mxu0 0.0
        %893 = vmatpush1.msra.mxu0 0.0
        %894 = vmatprep.subr.mxu0 0.0
        %895 = vmatpush1.msra.mxu0 0.0
        %896 = vmatprep.subr.mxu0 0.0
        %897 = vmatpush1.msra.mxu0 0.0
        %898 = vmatprep.subr.mxu0 0.0
        %899 = vmatpush1.msra.mxu0 0.0
        %900 = vmatprep.subr.mxu0 0.0
        %901 = vmatpush1.msra.mxu0 0.0
        %902 = vmatprep.subr.mxu0 0.0
        %903 = vmatpush1.msra.mxu0 0.0
        %904 = vmatprep.subr.mxu0 0.0
        %905 = vmatpush1.msra.mxu0 0.0
        %906 = vmatprep.subr.mxu0 0.0
        %907 = vmatpush1.msra.mxu0 0.0
        %908 = vmatprep.subr.mxu0 0.0
        %909 = vmatpush1.msra.mxu0 0.0
        %910 = vmatprep.subr.mxu0 0.0
        %911 = vmatpush1.msra.mxu0 0.0
        %912 = vmatprep.subr.mxu0 0.0
        %913 = vmatpush1.msra.mxu0 0.0
        %914 = vmatprep.subr.mxu0 0.0
        %915 = vmatpush1.msra.mxu0 0.0
        %916 = vmatprep.subr.mxu0 0.0
        %917 = vmatpush1.msra.mxu0 0.0
        %918 = vmatprep.subr.mxu0 0.0
        %919 = vmatpush1.msra.mxu0 0.0
        %920 = vmatprep.subr.mxu0 0.0
        %921 = vmatpush1.msra.mxu0 0.0
        %922 = vmatprep.subr.mxu0 0.0
        %923 = vmatpush1.msra.mxu0 0.0
        %924 = vmatprep.subr.mxu0 0.0
        %925 = vmatpush1.msra.mxu0 0.0
        %926 = vmatprep.subr.mxu0 0.0
        %927 = vmatpush1.msra.mxu0 0.0
        %928 = vmatprep.subr.mxu0 0.0
        %929 = vmatpush1.msra.mxu0 0.0
        %930 = vmatprep.subr.mxu0 0.0
        %931 = vmatpush1.msra.mxu0 0.0
        %932 = vmatprep.subr.mxu0 0.0
        %933 = vmatpush1.msra.mxu0 0.0
        %934 = vmatprep.subr.mxu0 0.0
        %935 = vmatpush1.msra.mxu0 0.0
        %936 = vmatprep.mubr.f32.mxu0 0.0
        %937 = vmatmul.mubr.f32.gmra.mrb[0].mxu0 %v867
        %v938 = vpop.f32.mrb[0].mxu0
        %v939 = vadd.f32 %v865, %v938
        %v940 = vpop.f32.mrb[0].mxu0
        %941 = vmatprep.mubr.f32.mxu0 0.0
        %942 = vmatmul.mubr.f32.gmra.mrb[0].mxu0 %v870
        %v943 = vpop.f32.mrb[0].mxu0
        %v944 = vadd.f32 %v865, %v943
        %v945 = vpop.f32.mrb[0].mxu0
        %946 = vdwg.mxu0
        %947 = vst [vmem:[%s232] sm:$0xff] %v939
        %948 = vst [vmem:[%s232 + $0x8] sm:$0xff] %v944
        %s949 = sand.u32 %s142, 1
        %s950 = scalar_lea.sflag [#allocation3], %s949
        %s951 = sand.u32 %s142, 1
        %s952 = smul.addr %s951, 16
        %s953 = scalar_lea.vmem [#allocation2], %s952
        // Predicated region
        $region41: #{tpu_custom_call.1} parent=39 // pred_check
          %p954 = pneg %p152
        $region42: #{tpu_custom_call.1} parent=39 // pred_check_branch
          %956 = sbr.rel (%p954) target = $region44
        $region43: #{tpu_custom_call.1} parent=39 // pred_region
          %s958 = ssub.s32 256, 256
          %959 = vsyncadd %s950, %s958
          %s960 = smul.addr %s19, 2
          %s961 = smul.addr %s960, 128
          %s962 = scalar_lea.hbm %s5, %s961
          %s963 = sshll.u32 %s953, 4
          %s964 = int_to_ptr.vmem [resolvable:$true] %s963
          %969 = dma.vmem_to_hbm [thread:$0]  %s964, 256, %s962, %s950, 128, 128, 8
        $region44: #{tpu_custom_call.1} parent=39 // pred_fallthru
          _
      $region40: #{tpu_custom_call.1} parent=5 // pred_fallthru
        _
      %p970 = scmp.le.s32.totalorder 2, %s14
      // Predicated region
      $region45: #{tpu_custom_call.1} parent=5 // pred_check
        %p971 = pneg %p970
      $region46: #{tpu_custom_call.1} parent=5 // pred_check_branch
        %973 = sbr.rel (%p971) target = $region48
      $region47: #{tpu_custom_call.1} parent=5 // pred_region
        %s974 = ssub.s32 %s14, 2
        // Predicated region
        $region49: #{tpu_custom_call.1} parent=47 // pred_check
          %p975 = pneg %p158
        $region50: #{tpu_custom_call.1} parent=47 // pred_check_branch
          %977 = sbr.rel (%p975) target = $region52
        $region51: #{tpu_custom_call.1} parent=47 // pred_region
          %s978 = sand.u32 %s143, 1
          %s979 = scalar_lea.sflag [#allocation3], %s978
          %s980 = sand.u32 %s143, 1
          %s981 = smul.addr %s980, 16
          %s982 = scalar_lea.vmem [#allocation2], %s981
          %983 = dma.done %s979, 256
        $region52: #{tpu_custom_call.1} parent=47 // pred_fallthru
          _
      $region48: #{tpu_custom_call.1} parent=5 // pred_fallthru
        _
    $region6: #{tpu_custom_call.1} parent=1 // loop_footer
      %s18 = sadd.s32 1, %s14
    $region7: #{tpu_custom_call.1} parent=1 // loop_footer_branch
      %13 = sbr.rel target = $region3
    $region8: #{tpu_custom_call.1} parent=1 // loop_exit
      _
    %984 = vsyncpa [#allocation3], 1
    %s985 = scalar_lea.sflag [#allocation3], 1
    %986 = vsyncpa %s985, 1

</llo_original>
